<compile_context>
chip_gen: v6e
topology: v6e:2x2x1
jax: 0.10.0
libtpu: 0.0.40
codegen_flags: <defaults>
</compile_context>

<pallas_src>
import jax
import jax.numpy as jnp
from jax import lax
from jax.experimental import pallas as pl
from jax.experimental.pallas import tpu as pltpu


def _classify_kernel(x_ref, w1_ref, b1_ref, w2_ref, b2_ref, o_ref):
    # emb: Linear(F -> H) with eval-mode BatchNorm folded into w1/b1
    # (MXU, bf16 inputs, f32 accumulation).
    h = jnp.dot(x_ref[...], w1_ref[...],
                preferred_element_type=jnp.float32)          # (TB, Hp) f32
    h = h + b1_ref[...]                                      # folded bias (VPU)
    h = jnp.maximum(h, 0.0)                                  # ReLU; Dropout=id (eval)
    # cls: Linear(H -> 1): contract dim 1 of w2 (1, Hp) with dim 1 of h (TB, Hp)
    # -> lane-dense (1, TB) row, no explicit transpose of h.
    o_ref[...] = lax.dot_general(
        w2_ref[...], h,
        dimension_numbers=(((1,), (1,)), ((), ())),
        preferred_element_type=jnp.float32) + b2_ref[0]


def _round_up(x, m):
    return ((x + m - 1) // m) * m


def classify_forward(feat, params):
    """feat: (B, F) float. Returns (B, 1) float32 (eval-mode forward)."""
    B, F = feat.shape
    H = params["w1"].shape[1]

    # ---- fold eval-mode BatchNorm1d into the first Linear (trace time, f32) ----
    eps = 1e-5
    inv_std = 1.0 / jnp.sqrt(params["bn_var"] + eps)
    scale = params["bn_gamma"] * inv_std                      # (H,)
    shift = params["bn_beta"] - params["bn_mean"] * scale     # (H,)
    w1_f = params["w1"] * scale[None, :]                      # (F, H)
    b1_f = params["b1"] * scale + shift                       # (H,)

    # ---- lane/MXU aligned padded sizes ----
    F_pad = _round_up(F, 128)
    H_pad = _round_up(H, 128)

    # ---- generation-aware VMEM budget ----
    try:
        phys_vmem = int(pltpu.get_tpu_info().vmem_capacity_bytes)
    except Exception:
        phys_vmem = 64 * 1024 * 1024
    vmem_limit = max(16 << 20, min(int(phys_vmem * 3 // 4), 112 << 20))

    # ---- batch tile: ~1 MiB bf16 feat tile, >=128, multiple of 128 ----
    tgt = ((1 << 20) // (F_pad * 2)) // 128 * 128
    tile_b = int(min(max(tgt, 128), 2048))
    B128 = _round_up(max(B, 1), 128)
    if B128 < tile_b:
        tile_b = B128

    def _vmem_est(tb, w1_bufs):
        return (2 * tb * F_pad * 2            # feat tile (bf16), double-buffered
                + 2 * tb * 4                  # output row tile (f32), double-buffered
                + w1_bufs * F_pad * H_pad * 2 # w1 (bf16)
                + 4 * H_pad * 4               # b1, w2 (f32)
                + tb * H_pad * 4              # h intermediate
                + tb * F_pad * 4)             # staging headroom

    while tile_b > 128 and _vmem_est(tile_b, 2) > int(vmem_limit * 0.8):
        tile_b -= 128

    B_pad = _round_up(max(B, 1), tile_b)
    grid = (B_pad // tile_b,)

    # ---- pad inputs (feat cast to bf16 BEFORE padding) ----
    x = jnp.pad(feat.astype(jnp.bfloat16), ((0, B_pad - B), (0, F_pad - F)))
    w1p = jnp.pad(w1_f.astype(jnp.bfloat16), ((0, F_pad - F), (0, H_pad - H)))
    b1p = jnp.pad(b1_f.astype(jnp.float32), (0, H_pad - H)).reshape(1, H_pad)
    w2p = jnp.pad(params["w2"].reshape(H).astype(jnp.float32),
                  (0, H_pad - H)).reshape(1, H_pad)
    b2 = params["b2"].reshape(1).astype(jnp.float32)

    cost = pl.CostEstimate(
        flops=2 * B_pad * F_pad * H_pad + 2 * B_pad * H_pad,
        transcendentals=0,
        bytes_accessed=(x.size * 2 + w1p.size * 2 + b1p.size * 4
                        + w2p.size * 4 + b2.size * 4 + B_pad * 4),
    )

    def _in_specs(single_buffer_weights):
        resident = ({"pipeline_mode": pl.Buffered(1)}
                    if single_buffer_weights else {})
        return [
            pl.BlockSpec((tile_b, F_pad), lambda i: (i, 0)),             # feat tile
            pl.BlockSpec((F_pad, H_pad), lambda i: (0, 0), **resident),  # w1 resident
            pl.BlockSpec((1, H_pad), lambda i: (0, 0), **resident),      # b1 folded
            pl.BlockSpec((1, H_pad), lambda i: (0, 0), **resident),      # w2 row
            pl.BlockSpec(memory_space=pltpu.MemorySpace.SMEM),           # b2 scalar
        ]

    def _run(single_buffer_weights):
        return pl.pallas_call(
            _classify_kernel,
            out_shape=jax.ShapeDtypeStruct((1, B_pad), jnp.float32),
            grid=grid,
            in_specs=_in_specs(single_buffer_weights),
            out_specs=pl.BlockSpec((1, tile_b), lambda i: (0, i)),  # lane-dense row
            compiler_params=pltpu.CompilerParams(
                dimension_semantics=("parallel",),
                vmem_limit_bytes=vmem_limit,
            ),
            cost_estimate=cost,
        )(x, w1p, b1p, w2p, b2)

    try:
        out = _run(single_buffer_weights=True)
    except Exception:
        # Fallback: default (double) buffering of the resident weight blocks.
        out = _run(single_buffer_weights=False)

    return out[0, :B].reshape(B, 1)


def classify_reference(feat, params):
    """Pure-JAX f32 eval-mode reference (matches the PyTorch module)."""
    eps = 1e-5
    h = feat.astype(jnp.float32) @ params["w1"] + params["b1"]
    h = (h - params["bn_mean"]) / jnp.sqrt(params["bn_var"] + eps)
    h = h * params["bn_gamma"] + params["bn_beta"]
    h = jnp.maximum(h, 0.0)                      # ReLU; Dropout identity (eval)
    return h @ params["w2"] + params["b2"]


def init_params(key, input_size, hidden_size):
    """Deterministic synthetic parameters matching Classify_Model's shapes."""
    k1, k2, k3, k4 = jax.random.split(key, 4)
    F, H = input_size, hidden_size
    # emb Linear(F, H): PyTorch default init ~ U(-1/sqrt(F), 1/sqrt(F)); stored
    # as (in, out) so the kernel computes x @ W directly.
    bound1 = 1.0 / jnp.sqrt(F)
    w1 = jax.random.uniform(k1, (F, H), jnp.float32, -bound1, bound1)
    b1 = jax.random.uniform(k2, (H,), jnp.float32, -bound1, bound1)
    # BatchNorm1d(H): gamma=1, beta=0, plus synthetic running stats.
    bn_gamma = jnp.ones((H,), jnp.float32)
    bn_beta = jnp.zeros((H,), jnp.float32)
    bn_mean = 0.05 * jax.random.normal(k3, (H,), jnp.float32)
    bn_var = jnp.ones((H,), jnp.float32)
    # cls Linear(H, 1): xavier_uniform weight, zero bias (init_weights).
    gain = jnp.sqrt(6.0 / (H + 1))
    w2 = jax.random.uniform(k4, (H, 1), jnp.float32, -gain, gain)
    b2 = jnp.zeros((1,), jnp.float32)
    return dict(w1=w1, b1=b1, bn_gamma=bn_gamma, bn_beta=bn_beta,
                bn_mean=bn_mean, bn_var=bn_var, w2=w2, b2=b2)


if __name__ == "__main__":
    key = jax.random.PRNGKey(0)
    k_feat, k_params = jax.random.split(key)

    batch, input_size, hidden = 8, 32, 64
    feat = jax.random.normal(k_feat, (batch, input_size), jnp.float32)
    params = init_params(k_params, input_size, hidden)

    out = classify_forward(feat, params)
    out = jax.block_until_ready(out)
    assert out.shape == (batch, 1) and out.dtype == jnp.float32
    assert bool(jnp.all(jnp.isfinite(out)))

    # Loose tolerance: feat/w1 are rounded to bf16 before the MXU (~1e-2 rel).
    ref = classify_reference(feat, params)
    assert bool(jnp.allclose(out, ref, rtol=1e-1, atol=1e-1))

    print("KERNEL_OK")
</pallas_src>

<mosaic_0001>
module attributes {stable_mosaic.version = 11 : i64} {
  func.func @_classify_kernel(%arg0: i32, %arg1: memref<128x128xbf16, #tpu.memory_space<vmem>>, %arg2: memref<128x128xbf16, #tpu.memory_space<vmem>>, %arg3: memref<1x128xf32, #tpu.memory_space<vmem>>, %arg4: memref<1x128xf32, #tpu.memory_space<vmem>>, %arg5: memref<1xf32, #tpu.memory_space<smem>>, %arg6: memref<1x128xf32, #tpu.memory_space<vmem>>) attributes {dimension_semantics = [#tpu.dimension_semantics<parallel>], iteration_bounds = array<i64: 1>, scalar_prefetch = 0 : i64, scratch_operands = 0 : i64, tpu.core_type = #tpu.core_type<tc>, window_params = [{transform_indices = @transform_0, window_bounds = array<i64: 128, 128>}, {pipeline_mode = #tpu.pipeline_mode<synchronous>, transform_indices = @transform_1, window_bounds = array<i64: 128, 128>}, {pipeline_mode = #tpu.pipeline_mode<synchronous>, transform_indices = @transform_2, window_bounds = array<i64: 1, 128>}, {pipeline_mode = #tpu.pipeline_mode<synchronous>, transform_indices = @transform_3, window_bounds = array<i64: 1, 128>}, {transform_indices = @transform_4, window_bounds = array<i64: 1>}, {transform_indices = @transform_5, window_bounds = array<i64: 1, 128>}]} {
    %c0 = arith.constant 0 : index
    %c0_0 = arith.constant 0 : index
    %0 = vector.load %arg1[%c0, %c0_0] : memref<128x128xbf16, #tpu.memory_space<vmem>>, vector<128x128xbf16>
    %c0_1 = arith.constant 0 : index
    %c0_2 = arith.constant 0 : index
    %1 = vector.load %arg2[%c0_1, %c0_2] : memref<128x128xbf16, #tpu.memory_space<vmem>>, vector<128x128xbf16>
    %cst = arith.constant dense<0.000000e+00> : vector<128x128xf32>
    %2 = tpu.matmul %0, %1, %cst {dimension_numbers = #tpu.dot_dimension_numbers<[1], [0], [0], [1], [0, 0, 1, 1], [], []>} : vector<128x128xbf16>, vector<128x128xbf16>, vector<128x128xf32> -> vector<128x128xf32>
    %c0_3 = arith.constant 0 : index
    %c0_4 = arith.constant 0 : index
    %3 = vector.load %arg3[%c0_3, %c0_4] : memref<1x128xf32, #tpu.memory_space<vmem>>, vector<1x128xf32>
    %4 = vector.broadcast %3 : vector<1x128xf32> to vector<128x128xf32>
    %5 = arith.addf %2, %4 : vector<128x128xf32>
    %cst_5 = arith.constant 0.000000e+00 : f32
    %6 = vector.broadcast %cst_5 : f32 to vector<128x128xf32>
    %7 = arith.maximumf %5, %6 : vector<128x128xf32>
    %c0_6 = arith.constant 0 : index
    %c0_7 = arith.constant 0 : index
    %8 = vector.load %arg4[%c0_6, %c0_7] : memref<1x128xf32, #tpu.memory_space<vmem>>, vector<1x128xf32>
    %cst_8 = arith.constant dense<0.000000e+00> : vector<1x128xf32>
    %9 = tpu.matmul %8, %7, %cst_8 {dimension_numbers = #tpu.dot_dimension_numbers<[1], [1], [0], [0], [0, 0, 1, 0], [], []>} : vector<1x128xf32>, vector<128x128xf32>, vector<1x128xf32> -> vector<1x128xf32>
    %c0_9 = arith.constant 0 : index
    %10 = memref.load %arg5[%c0_9] : memref<1xf32, #tpu.memory_space<smem>>
    %11 = vector.broadcast %10 : f32 to vector<1x128xf32>
    %12 = arith.addf %9, %11 : vector<1x128xf32>
    %c0_10 = arith.constant 0 : index
    %c0_11 = arith.constant 0 : index
    %13 = vector.load %arg6[%c0_10, %c0_11] : memref<1x128xf32, #tpu.memory_space<vmem>>, vector<1x128xf32>
    tpu.vector_store %arg6[%c0_10, %c0_11], %12 {strides = array<i32>} : memref<1x128xf32, #tpu.memory_space<vmem>>, vector<1x128xf32>,
    return
  }
  func.func @transform_0(%arg0: i32) -> (i32, i32) {
    %c0_i32 = arith.constant 0 : i32
    %c0_i32_0 = arith.constant 0 : i32
    return %arg0, %c0_i32 : i32, i32
  }
  func.func @transform_1(%arg0: i32) -> (i32, i32) {
    %c0_i32 = arith.constant 0 : i32
    %c0_i32_0 = arith.constant 0 : i32
    %c0_i32_1 = arith.constant 0 : i32
    return %c0_i32, %c0_i32_0 : i32, i32
  }
  func.func @transform_2(%arg0: i32) -> (i32, i32) {
    %c0_i32 = arith.constant 0 : i32
    %c0_i32_0 = arith.constant 0 : i32
    %c0_i32_1 = arith.constant 0 : i32
    return %c0_i32, %c0_i32_0 : i32, i32
  }
  func.func @transform_3(%arg0: i32) -> (i32, i32) {
    %c0_i32 = arith.constant 0 : i32
    %c0_i32_0 = arith.constant 0 : i32
    %c0_i32_1 = arith.constant 0 : i32
    return %c0_i32, %c0_i32_0 : i32, i32
  }
  func.func @transform_4(%arg0: i32) -> i32 {
    %c0_i32 = arith.constant 0 : i32
    %c0_i32_0 = arith.constant 0 : i32
    return %c0_i32 : i32
  }
  func.func @transform_5(%arg0: i32) -> (i32, i32) {
    %c0_i32 = arith.constant 0 : i32
    %c0_i32_0 = arith.constant 0 : i32
    return %c0_i32, %arg0 : i32, i32
  }
}

module attributes {stable_mosaic.version = 11 : i64} {
  func.func @_classify_kernel(%arg0: i32, %arg1: memref<128x128xbf16, #tpu.memory_space<vmem>>, %arg2: memref<128x128xbf16, #tpu.memory_space<vmem>>, %arg3: memref<1x128xf32, #tpu.memory_space<vmem>>, %arg4: memref<1x128xf32, #tpu.memory_space<vmem>>, %arg5: memref<1xf32, #tpu.memory_space<smem>>, %arg6: memref<1x128xf32, #tpu.memory_space<vmem>>) attributes {dimension_semantics = [#tpu.dimension_semantics<parallel>], iteration_bounds = array<i64: 1>, scalar_prefetch = 0 : i64, scratch_operands = 0 : i64, tpu.core_type = #tpu.core_type<tc>, window_params = [{transform_indices = @transform_0, window_bounds = array<i64: 128, 128>}, {pipeline_mode = #tpu.pipeline_mode<synchronous>, transform_indices = @transform_1, window_bounds = array<i64: 128, 128>}, {pipeline_mode = #tpu.pipeline_mode<synchronous>, transform_indices = @transform_2, window_bounds = array<i64: 1, 128>}, {pipeline_mode = #tpu.pipeline_mode<synchronous>, transform_indices = @transform_3, window_bounds = array<i64: 1, 128>}, {transform_indices = @transform_4, window_bounds = array<i64: 1>}, {transform_indices = @transform_5, window_bounds = array<i64: 1, 128>}]} {
    %c0 = arith.constant 0 : index
    %c0_0 = arith.constant 0 : index
    %0 = vector.load %arg1[%c0, %c0_0] : memref<128x128xbf16, #tpu.memory_space<vmem>>, vector<128x128xbf16>
    %c0_1 = arith.constant 0 : index
    %c0_2 = arith.constant 0 : index
    %1 = vector.load %arg2[%c0_1, %c0_2] : memref<128x128xbf16, #tpu.memory_space<vmem>>, vector<128x128xbf16>
    %cst = arith.constant dense<0.000000e+00> : vector<128x128xf32>
    %2 = tpu.matmul %0, %1, %cst {dimension_numbers = #tpu.dot_dimension_numbers<[1], [0], [0], [1], [0, 0, 1, 1], [], []>} : vector<128x128xbf16>, vector<128x128xbf16>, vector<128x128xf32> -> vector<128x128xf32>
    %c0_3 = arith.constant 0 : index
    %c0_4 = arith.constant 0 : index
    %3 = vector.load %arg3[%c0_3, %c0_4] : memref<1x128xf32, #tpu.memory_space<vmem>>, vector<1x128xf32>
    %4 = vector.broadcast %3 : vector<1x128xf32> to vector<128x128xf32>
    %5 = arith.addf %2, %4 : vector<128x128xf32>
    %cst_5 = arith.constant 0.000000e+00 : f32
    %6 = vector.broadcast %cst_5 : f32 to vector<128x128xf32>
    %7 = arith.maximumf %5, %6 : vector<128x128xf32>
    %c0_6 = arith.constant 0 : index
    %c0_7 = arith.constant 0 : index
    %8 = vector.load %arg4[%c0_6, %c0_7] : memref<1x128xf32, #tpu.memory_space<vmem>>, vector<1x128xf32>
    %cst_8 = arith.constant dense<0.000000e+00> : vector<1x128xf32>
    %9 = tpu.matmul %8, %7, %cst_8 {dimension_numbers = #tpu.dot_dimension_numbers<[1], [1], [0], [0], [0, 0, 1, 0], [], []>} : vector<1x128xf32>, vector<128x128xf32>, vector<1x128xf32> -> vector<1x128xf32>
    %c0_9 = arith.constant 0 : index
    %10 = memref.load %arg5[%c0_9] : memref<1xf32, #tpu.memory_space<smem>>
    %11 = vector.broadcast %10 : f32 to vector<1x128xf32>
    %12 = arith.addf %9, %11 : vector<1x128xf32>
    %c0_10 = arith.constant 0 : index
    %c0_11 = arith.constant 0 : index
    %13 = vector.load %arg6[%c0_10, %c0_11] : memref<1x128xf32, #tpu.memory_space<vmem>>, vector<1x128xf32>
    tpu.vector_store %arg6[%c0_10, %c0_11], %12 {strides = array<i32>} : memref<1x128xf32, #tpu.memory_space<vmem>>, vector<1x128xf32>,
    return
  }
  func.func @transform_0(%arg0: i32) -> (i32, i32) {
    %c0_i32 = arith.constant 0 : i32
    %c0_i32_0 = arith.constant 0 : i32
    return %arg0, %c0_i32 : i32, i32
  }
  func.func @transform_1(%arg0: i32) -> (i32, i32) {
    %c0_i32 = arith.constant 0 : i32
    %c0_i32_0 = arith.constant 0 : i32
    %c0_i32_1 = arith.constant 0 : i32
    return %c0_i32, %c0_i32_0 : i32, i32
  }
  func.func @transform_2(%arg0: i32) -> (i32, i32) {
    %c0_i32 = arith.constant 0 : i32
    %c0_i32_0 = arith.constant 0 : i32
    %c0_i32_1 = arith.constant 0 : i32
    return %c0_i32, %c0_i32_0 : i32, i32
  }
  func.func @transform_3(%arg0: i32) -> (i32, i32) {
    %c0_i32 = arith.constant 0 : i32
    %c0_i32_0 = arith.constant 0 : i32
    %c0_i32_1 = arith.constant 0 : i32
    return %c0_i32, %c0_i32_0 : i32, i32
  }
  func.func @transform_4(%arg0: i32) -> i32 {
    %c0_i32 = arith.constant 0 : i32
    %c0_i32_0 = arith.constant 0 : i32
    return %c0_i32 : i32
  }
  func.func @transform_5(%arg0: i32) -> (i32, i32) {
    %c0_i32 = arith.constant 0 : i32
    %c0_i32_0 = arith.constant 0 : i32
    return %c0_i32, %arg0 : i32, i32
  }
}

</mosaic_0001>

<llo_original>
// kernel: tpu_custom_call.1
$region0: #{tpu_custom_call.1}
  #allocation0 [shape = 'u32[]', space=smem, size = 0x4, offset = 0x4, fixed_abs, tag = 'smem constant byte address 0x4 - core index']
  #allocation1 [shape = 'u32[144,128]{1,0:T(1,128)}', space=vmem, size = 0x12000, scoped, tag = 'internal scratch']
  #allocation2 [shape = 'f32[1]{0:T(128)S(6)}', space=smem, size = 0x200, scoped, tag = 'scoped memory for tpu_custom_call.1']
  %s0 = inlined_call_operand.hbm [shape: bf16[128,128], index: 0, kind: input, shape index: {}]
  %s1 = inlined_call_operand.hbm [shape: bf16[128,128], index: 1, kind: input, shape index: {}]
  %s2 = inlined_call_operand.vmem [shape: f32[1,128], index: 2, kind: input, shape index: {}]
  %s3 = inlined_call_operand.vmem [shape: f32[1,128], index: 3, kind: input, shape index: {}]
  %s4 = inlined_call_operand.<no memory space> [shape: f32[1], index: 4, kind: input, shape index: {}]
  %s5 = inlined_call_operand.hbm [shape: f32[1,128], index: 5, kind: output, shape index: {}]
  %s6 = sld [smem:[#allocation0]]
  $region38: #{tpu_custom_call.1} parent=0
    _
  %s8 = ssub.s32 1, %s6
  %s9 = scalar_select 0, %s8, %s6
  %10 = sst [smem:[#allocation2]] %s4
  $region1: #{tpu_custom_call.1} parent=0
    #allocation3 [shape = 'u8[32768]{0}', space=vmem, size = 0x8000, scoped, tag = 'input window, operand 0, single buffered']
    #allocation4 [shape = 's32[1]{0}', space=sflag, size = 0x4, scoped, tag = 'scoped memory for tpu_custom_call.1']
    #allocation5 [shape = 's32[1]{0}', space=sflag, size = 0x4, scoped, tag = 'scoped memory for tpu_custom_call.1']
    #allocation6 [shape = 'u8[32768]{0}', space=vmem, size = 0x8000, scoped, tag = 'input window, operand 1, single buffered']
    #allocation7 [shape = 's32[1]{0}', space=sflag, size = 0x4, scoped, tag = 'scoped memory for tpu_custom_call.1']
    #allocation8 [shape = 'u8[512]{0}', space=vmem, size = 0x400, scoped, tag = 'output window, operand 0, single buffered']
    %11 = vsyncpa [#allocation4], 0
    %12 = vsyncpa [#allocation7], 0
    %13 = vsyncpa [#allocation5], 0
    // Predicated region
    $region2: #{tpu_custom_call.1} parent=1 // pred_check
      _
    $region3: #{tpu_custom_call.1} parent=1 // pred_check_branch
      %15 = sbr.rel (0) target = $region5
    $region4: #{tpu_custom_call.1} parent=1 // pred_region
      %s17 = ssub.s32 1024, 1024
      %18 = vsyncadd [#allocation4], %s17
      %s19 = sshll.u32 [#allocation3], 4
      %s20 = int_to_ptr.vmem [resolvable:$true] %s19
      %25 = dma.hbm_to_vmem [thread:$0]  %s0, 1024, %s20, [#allocation4], 64, 64, 4
    $region5: #{tpu_custom_call.1} parent=1 // pred_fallthru
      _
    // Predicated region
    $region6: #{tpu_custom_call.1} parent=1 // pred_check
      _
    $region7: #{tpu_custom_call.1} parent=1 // pred_check_branch
      %27 = sbr.rel (0) target = $region9
    $region8: #{tpu_custom_call.1} parent=1 // pred_region
      %s29 = ssub.s32 1024, 1024
      %30 = vsyncadd [#allocation7], %s29
      %s31 = sshll.u32 [#allocation6], 4
      %s32 = int_to_ptr.vmem [resolvable:$true] %s31
      %37 = dma.hbm_to_vmem [thread:$0]  %s1, 1024, %s32, [#allocation7], 64, 64, 4
    $region9: #{tpu_custom_call.1} parent=1 // pred_fallthru
      _
    // Predicated region
    $region10: #{tpu_custom_call.1} parent=1 // pred_check
      _
    $region11: #{tpu_custom_call.1} parent=1 // pred_check_branch
      %39 = sbr.rel (0) target = $region13
    $region12: #{tpu_custom_call.1} parent=1 // pred_region
      _
    $region13: #{tpu_custom_call.1} parent=1 // pred_fallthru
      _
    // Predicated region
    $region14: #{tpu_custom_call.1} parent=1 // pred_check
      _
    $region15: #{tpu_custom_call.1} parent=1 // pred_check_branch
      %41 = sbr.rel (0) target = $region17
    $region16: #{tpu_custom_call.1} parent=1 // pred_region
      _
    $region17: #{tpu_custom_call.1} parent=1 // pred_fallthru
      _
    // Predicated region
    $region18: #{tpu_custom_call.1} parent=1 // pred_check
      _
    $region19: #{tpu_custom_call.1} parent=1 // pred_check_branch
      %43 = sbr.rel (0) target = $region21
    $region20: #{tpu_custom_call.1} parent=1 // pred_region
      _
    $region21: #{tpu_custom_call.1} parent=1 // pred_fallthru
      _
    // Predicated region
    $region22: #{tpu_custom_call.1} parent=1 // pred_check
      _
    $region23: #{tpu_custom_call.1} parent=1 // pred_check_branch
      %45 = sbr.rel (0) target = $region25
    $region24: #{tpu_custom_call.1} parent=1 // pred_region
      %46 = dma.done [#allocation4], 1024
    $region25: #{tpu_custom_call.1} parent=1 // pred_fallthru
      _
    // Predicated region
    $region26: #{tpu_custom_call.1} parent=1 // pred_check
      _
    $region27: #{tpu_custom_call.1} parent=1 // pred_check_branch
      %48 = sbr.rel (0) target = $region29
    $region28: #{tpu_custom_call.1} parent=1 // pred_region
      %49 = dma.done [#allocation7], 1024
    $region29: #{tpu_custom_call.1} parent=1 // pred_fallthru
      _
    %v51 = vld [vmem:[#allocation3] sm:$0xf]
    %v52 = vld [vmem:[#allocation3 + $0x4] sm:$0xf]
    %v53 = vld [vmem:[#allocation3 + $0x8] sm:$0xf]
    %v54 = vld [vmem:[#allocation3 + $0xc] sm:$0xf]
    %v55 = vld [vmem:[#allocation3 + $0x10] sm:$0xf]
    %v56 = vld [vmem:[#allocation3 + $0x14] sm:$0xf]
    %v57 = vld [vmem:[#allocation3 + $0x18] sm:$0xf]
    %v58 = vld [vmem:[#allocation3 + $0x1c] sm:$0xf]
    %v59 = vld [vmem:[#allocation3 + $0x20] sm:$0xf]
    %v60 = vld [vmem:[#allocation3 + $0x24] sm:$0xf]
    %v61 = vld [vmem:[#allocation3 + $0x28] sm:$0xf]
    %v62 = vld [vmem:[#allocation3 + $0x2c] sm:$0xf]
    %v63 = vld [vmem:[#allocation3 + $0x30] sm:$0xf]
    %v64 = vld [vmem:[#allocation3 + $0x34] sm:$0xf]
    %v65 = vld [vmem:[#allocation3 + $0x38] sm:$0xf]
    %v66 = vld [vmem:[#allocation3 + $0x3c] sm:$0xf]
    %v67 = vld [vmem:[#allocation6] sm:$0xf]
    %v68 = vld [vmem:[#allocation6 + $0x4] sm:$0xf]
    %v69 = vld [vmem:[#allocation6 + $0x8] sm:$0xf]
    %v70 = vld [vmem:[#allocation6 + $0xc] sm:$0xf]
    %v71 = vld [vmem:[#allocation6 + $0x10] sm:$0xf]
    %v72 = vld [vmem:[#allocation6 + $0x14] sm:$0xf]
    %v73 = vld [vmem:[#allocation6 + $0x18] sm:$0xf]
    %v74 = vld [vmem:[#allocation6 + $0x1c] sm:$0xf]
    %v75 = vld [vmem:[#allocation6 + $0x20] sm:$0xf]
    %v76 = vld [vmem:[#allocation6 + $0x24] sm:$0xf]
    %v77 = vld [vmem:[#allocation6 + $0x28] sm:$0xf]
    %v78 = vld [vmem:[#allocation6 + $0x2c] sm:$0xf]
    %v79 = vld [vmem:[#allocation6 + $0x30] sm:$0xf]
    %v80 = vld [vmem:[#allocation6 + $0x34] sm:$0xf]
    %v81 = vld [vmem:[#allocation6 + $0x38] sm:$0xf]
    %v82 = vld [vmem:[#allocation6 + $0x3c] sm:$0xf]
    %v83 = vld [vmem:[%s2] sm:$0x1]
    %v85 = vlaneseq
    %v86 = vshrl.u32 %v85, 7
    %v87 = vsub.s32 0, %v86
    %v88 = vrot.slane %v83, %v87
    %v106 = vunpack.c.l.b16 %v51
    %v107 = vunpack.c.l.b16 %v52
    %v108 = vunpack.c.l.b16 %v53
    %v109 = vunpack.c.l.b16 %v54
    %v110 = vunpack.c.l.b16 %v55
    %v111 = vunpack.c.l.b16 %v56
    %v112 = vunpack.c.l.b16 %v57
    %v113 = vunpack.c.l.b16 %v58
    %v114 = vunpack.c.l.b16 %v59
    %v115 = vunpack.c.l.b16 %v60
    %v116 = vunpack.c.l.b16 %v61
    %v117 = vunpack.c.l.b16 %v62
    %v118 = vunpack.c.l.b16 %v63
    %v119 = vunpack.c.l.b16 %v64
    %v120 = vunpack.c.l.b16 %v65
    %v121 = vunpack.c.l.b16 %v66
    %v122 = vpack.c.b16 %v107, %v106
    %v123 = vpack.c.b16 %v109, %v108
    %v124 = vpack.c.b16 %v111, %v110
    %v125 = vpack.c.b16 %v113, %v112
    %v126 = vpack.c.b16 %v115, %v114
    %v127 = vpack.c.b16 %v117, %v116
    %v128 = vpack.c.b16 %v119, %v118
    %v129 = vpack.c.b16 %v121, %v120
    %v154 = vunpack.c.l.b16 %v67
    %v155 = vunpack.c.l.b16 %v68
    %v156 = vunpack.c.l.b16 %v69
    %v157 = vunpack.c.l.b16 %v70
    %v158 = vunpack.c.l.b16 %v71
    %v159 = vunpack.c.l.b16 %v72
    %v160 = vunpack.c.l.b16 %v73
    %v161 = vunpack.c.l.b16 %v74
    %v162 = vunpack.c.l.b16 %v75
    %v163 = vunpack.c.l.b16 %v76
    %v164 = vunpack.c.l.b16 %v77
    %v165 = vunpack.c.l.b16 %v78
    %v166 = vunpack.c.l.b16 %v79
    %v167 = vunpack.c.l.b16 %v80
    %v168 = vunpack.c.l.b16 %v81
    %v169 = vunpack.c.l.b16 %v82
    %v170 = vpack.c.b16 %v155, %v154
    %v171 = vpack.c.b16 %v157, %v156
    %v172 = vpack.c.b16 %v159, %v158
    %v173 = vpack.c.b16 %v161, %v160
    %v174 = vpack.c.b16 %v163, %v162
    %v175 = vpack.c.b16 %v165, %v164
    %v176 = vpack.c.b16 %v167, %v166
    %v177 = vpack.c.b16 %v169, %v168
    %186 = vmatprep.subr.bf16.mxu0 0
    %187 = vmatpush1.bf16.msra.mxu0 %v177
    %188 = vmatprep.subr.bf16.mxu0 0
    %189 = vmatpush1.bf16.msra.mxu0 %v176
    %190 = vmatprep.subr.bf16.mxu0 0
    %191 = vmatpush1.bf16.msra.mxu0 %v175
    %192 = vmatprep.subr.bf16.mxu0 0
    %193 = vmatpush1.bf16.msra.mxu0 %v174
    %194 = vmatprep.subr.bf16.mxu0 0
    %195 = vmatpush1.bf16.msra.mxu0 %v173
    %196 = vmatprep.subr.bf16.mxu0 0
    %197 = vmatpush1.bf16.msra.mxu0 %v172
    %198 = vmatprep.subr.bf16.mxu0 0
    %199 = vmatpush1.bf16.msra.mxu0 %v171
    %200 = vmatprep.subr.bf16.mxu0 0
    %201 = vmatpush1.bf16.msra.mxu0 %v170
    %202 = vmatprep.subr.bf16.mxu0 0
    %203 = vmatpush2.bf16.msra.mxu0 0
    %204 = vmatprep.subr.bf16.mxu0 0
    %205 = vmatpush2.bf16.msra.mxu0 0
    %206 = vmatprep.subr.bf16.mxu0 0
    %207 = vmatpush2.bf16.msra.mxu0 0
    %208 = vmatprep.subr.bf16.mxu0 0
    %209 = vmatpush2.bf16.msra.mxu0 0
    %210 = vmatprep.subr.bf16.mxu0 0
    %211 = vmatpush2.bf16.msra.mxu0 0
    %212 = vmatprep.subr.bf16.mxu0 0
    %213 = vmatpush2.bf16.msra.mxu0 0
    %214 = vmatprep.subr.bf16.mxu0 0
    %215 = vmatpush2.bf16.msra.mxu0 0
    %216 = vmatprep.subr.bf16.mxu0 0
    %217 = vmatpush2.bf16.msra.mxu0 0
    %218 = vmatprep.mubr.bf16.mxu0 0
    %219 = vmatmul.mubr.bf16.gmra.mxu0 %v122
    %v220 = vpop.f32.mrf.mxu0
    %v221 = vadd.f32 %v88, %v220
    %v222 = vpop.f32.mrf.mxu0
    %v223 = vpop.f32.mrf.mxu0
    %v224 = vadd.f32 %v88, %v223
    %v225 = vpop.f32.mrf.mxu0
    %226 = vmatprep.mubr.bf16.mxu0 0
    %227 = vmatmul.mubr.bf16.gmra.mxu0 %v123
    %v228 = vpop.f32.mrf.mxu0
    %v229 = vadd.f32 %v88, %v228
    %v230 = vpop.f32.mrf.mxu0
    %v231 = vpop.f32.mrf.mxu0
    %v232 = vadd.f32 %v88, %v231
    %v233 = vpop.f32.mrf.mxu0
    %234 = vmatprep.mubr.bf16.mxu0 0
    %235 = vmatmul.mubr.bf16.gmra.mxu0 %v124
    %v236 = vpop.f32.mrf.mxu0
    %v237 = vadd.f32 %v88, %v236
    %v238 = vpop.f32.mrf.mxu0
    %v239 = vpop.f32.mrf.mxu0
    %v240 = vadd.f32 %v88, %v239
    %v241 = vpop.f32.mrf.mxu0
    %242 = vmatprep.mubr.bf16.mxu0 0
    %243 = vmatmul.mubr.bf16.gmra.mxu0 %v125
    %v244 = vpop.f32.mrf.mxu0
    %v245 = vadd.f32 %v88, %v244
    %v246 = vpop.f32.mrf.mxu0
    %v247 = vpop.f32.mrf.mxu0
    %v248 = vadd.f32 %v88, %v247
    %v249 = vpop.f32.mrf.mxu0
    %250 = vmatprep.mubr.bf16.mxu0 0
    %251 = vmatmul.mubr.bf16.gmra.mxu0 %v126
    %v252 = vpop.f32.mrf.mxu0
    %v253 = vadd.f32 %v88, %v252
    %v254 = vpop.f32.mrf.mxu0
    %v255 = vpop.f32.mrf.mxu0
    %v256 = vadd.f32 %v88, %v255
    %v257 = vpop.f32.mrf.mxu0
    %258 = vmatprep.mubr.bf16.mxu0 0
    %259 = vmatmul.mubr.bf16.gmra.mxu0 %v127
    %v260 = vpop.f32.mrf.mxu0
    %v261 = vadd.f32 %v88, %v260
    %v262 = vpop.f32.mrf.mxu0
    %v263 = vpop.f32.mrf.mxu0
    %v264 = vadd.f32 %v88, %v263
    %v265 = vpop.f32.mrf.mxu0
    %266 = vmatprep.mubr.bf16.mxu0 0
    %267 = vmatmul.mubr.bf16.gmra.mxu0 %v128
    %v268 = vpop.f32.mrf.mxu0
    %v269 = vadd.f32 %v88, %v268
    %v270 = vpop.f32.mrf.mxu0
    %v271 = vpop.f32.mrf.mxu0
    %v272 = vadd.f32 %v88, %v271
    %v273 = vpop.f32.mrf.mxu0
    %274 = vmatprep.mubr.bf16.mxu0 0
    %275 = vmatmul.mubr.bf16.gmra.mxu0 %v129
    %v276 = vpop.f32.mrf.mxu0
    %v277 = vadd.f32 %v88, %v276
    %v278 = vpop.f32.mrf.mxu0
    %v279 = vpop.f32.mrf.mxu0
    %v280 = vadd.f32 %v88, %v279
    %v281 = vpop.f32.mrf.mxu0
    %282 = vdwg.mxu0
    %v283 = vmax.f32 %v221, 0.0
    %v284 = vmax.f32 %v224, 0.0
    %v285 = vmax.f32 %v229, 0.0
    %v286 = vmax.f32 %v232, 0.0
    %v287 = vmax.f32 %v237, 0.0
    %v288 = vmax.f32 %v240, 0.0
    %v289 = vmax.f32 %v245, 0.0
    %v290 = vmax.f32 %v248, 0.0
    %v291 = vmax.f32 %v253, 0.0
    %v292 = vmax.f32 %v256, 0.0
    %v293 = vmax.f32 %v261, 0.0
    %v294 = vmax.f32 %v264, 0.0
    %v295 = vmax.f32 %v269, 0.0
    %v296 = vmax.f32 %v272, 0.0
    %v297 = vmax.f32 %v277, 0.0
    %v298 = vmax.f32 %v280, 0.0
    %v299 = vld [vmem:[%s3] sm:$0x1]
    %s300 = sld [smem:[#allocation2]]
    %v301 = vstv %s300
    %302 = vmatprep.subr.mxu0 0.0
    %303 = vmatpush1.xpose.msra.mxu0 %v298
    %304 = vmatprep.subr.mxu0 0.0
    %305 = vmatpush1.xpose.msra.mxu0 %v297
    %306 = vmatprep.subr.mxu0 0.0
    %307 = vmatpush1.xpose.msra.mxu0 %v296
    %308 = vmatprep.subr.mxu0 0.0
    %309 = vmatpush1.xpose.msra.mxu0 %v295
    %310 = vmatprep.subr.mxu0 0.0
    %311 = vmatpush1.xpose.msra.mxu0 %v294
    %312 = vmatprep.subr.mxu0 0.0
    %313 = vmatpush1.xpose.msra.mxu0 %v293
    %314 = vmatprep.subr.mxu0 0.0
    %315 = vmatpush1.xpose.msra.mxu0 %v292
    %316 = vmatprep.subr.mxu0 0.0
    %317 = vmatpush1.xpose.msra.mxu0 %v291
    %318 = vmatprep.subr.mxu0 0.0
    %319 = vmatpush1.xpose.msra.mxu0 %v290
    %320 = vmatprep.subr.mxu0 0.0
    %321 = vmatpush1.xpose.msra.mxu0 %v289
    %322 = vmatprep.subr.mxu0 0.0
    %323 = vmatpush1.xpose.msra.mxu0 %v288
    %324 = vmatprep.subr.mxu0 0.0
    %325 = vmatpush1.xpose.msra.mxu0 %v287
    %326 = vmatprep.subr.mxu0 0.0
    %327 = vmatpush1.xpose.msra.mxu0 %v286
    %328 = vmatprep.subr.mxu0 0.0
    %329 = vmatpush1.xpose.msra.mxu0 %v285
    %330 = vmatprep.subr.mxu0 0.0
    %331 = vmatpush1.xpose.msra.mxu0 %v284
    %332 = vmatprep.subr.mxu0 0.0
    %333 = vmatpush1.xpose.msra.mxu0 %v283
    %334 = vmatprep.subr.mxu0 0.0
    %335 = vmatpush2.xpose.msra.mxu0 0.0
    %336 = vmatprep.subr.mxu0 0.0
    %337 = vmatpush2.xpose.msra.mxu0 0.0
    %338 = vmatprep.subr.mxu0 0.0
    %339 = vmatpush2.xpose.msra.mxu0 0.0
    %340 = vmatprep.subr.mxu0 0.0
    %341 = vmatpush2.xpose.msra.mxu0 0.0
    %342 = vmatprep.subr.mxu0 0.0
    %343 = vmatpush2.xpose.msra.mxu0 0.0
    %344 = vmatprep.subr.mxu0 0.0
    %345 = vmatpush2.xpose.msra.mxu0 0.0
    %346 = vmatprep.subr.mxu0 0.0
    %347 = vmatpush2.xpose.msra.mxu0 0.0
    %348 = vmatprep.subr.mxu0 0.0
    %349 = vmatpush2.xpose.msra.mxu0 0.0
    %350 = vmatprep.subr.mxu0 0.0
    %351 = vmatpush2.xpose.msra.mxu0 0.0
    %352 = vmatprep.subr.mxu0 0.0
    %353 = vmatpush2.xpose.msra.mxu0 0.0
    %354 = vmatprep.subr.mxu0 0.0
    %355 = vmatpush2.xpose.msra.mxu0 0.0
    %356 = vmatprep.subr.mxu0 0.0
    %357 = vmatpush2.xpose.msra.mxu0 0.0
    %358 = vmatprep.subr.mxu0 0.0
    %359 = vmatpush2.xpose.msra.mxu0 0.0
    %360 = vmatprep.subr.mxu0 0.0
    %361 = vmatpush2.xpose.msra.mxu0 0.0
    %362 = vmatprep.subr.mxu0 0.0
    %363 = vmatpush2.xpose.msra.mxu0 0.0
    %364 = vmatprep.subr.mxu0 0.0
    %365 = vmatpush2.xpose.msra.mxu0 0.0
    %366 = vmatprep.mubr.f32.mxu0 0.0
    %367 = vmatmul.mubr.f32.gmra.mxu0 %v299
    %v368 = vpop.f32.mrf.mxu0
    %v369 = vadd.f32 %v301, %v368
    %v370 = vpop.f32.mrf.mxu0
    %371 = vdwg.mxu0
    %372 = vst [vmem:[#allocation8] sm:$0x1] %v369
    // Predicated region
    $region30: #{tpu_custom_call.1} parent=1 // pred_check
      _
    $region31: #{tpu_custom_call.1} parent=1 // pred_check_branch
      %374 = sbr.rel (0) target = $region33
    $region32: #{tpu_custom_call.1} parent=1 // pred_region
      %s376 = ssub.s32 16, 16
      %377 = vsyncadd [#allocation5], %s376
      %s379 = sshll.u32 [#allocation8], 4
      %s380 = int_to_ptr.vmem [resolvable:$true] %s379
      %382 = dma.vmem_to_hbm [thread:$0]  %s380, 16, %s5, [#allocation5]
    $region33: #{tpu_custom_call.1} parent=1 // pred_fallthru
      _
    // Predicated region
    $region34: #{tpu_custom_call.1} parent=1 // pred_check
      _
    $region35: #{tpu_custom_call.1} parent=1 // pred_check_branch
      %384 = sbr.rel (0) target = $region37
    $region36: #{tpu_custom_call.1} parent=1 // pred_region
      %385 = dma.done [#allocation5], 16
    $region37: #{tpu_custom_call.1} parent=1 // pred_fallthru
      _
    %386 = vsyncpa [#allocation4], 1
    %387 = vsyncpa [#allocation7], 1
    %388 = vsyncpa [#allocation5], 1

// kernel: tpu_custom_call.1
$region0: #{tpu_custom_call.1}
  #allocation0 [shape = 'u32[]', space=smem, size = 0x4, offset = 0x4, fixed_abs, tag = 'smem constant byte address 0x4 - core index']
  #allocation1 [shape = 'u32[144,128]{1,0:T(1,128)}', space=vmem, size = 0x12000, scoped, tag = 'internal scratch']
  #allocation2 [shape = 'f32[1]{0:T(128)S(6)}', space=smem, size = 0x200, scoped, tag = 'scoped memory for tpu_custom_call.1']
  %s0 = inlined_call_operand.hbm [shape: bf16[128,128], index: 0, kind: input, shape index: {}]
  %s1 = inlined_call_operand.hbm [shape: bf16[128,128], index: 1, kind: input, shape index: {}]
  %s2 = inlined_call_operand.vmem [shape: f32[1,128], index: 2, kind: input, shape index: {}]
  %s3 = inlined_call_operand.vmem [shape: f32[1,128], index: 3, kind: input, shape index: {}]
  %s4 = inlined_call_operand.<no memory space> [shape: f32[1], index: 4, kind: input, shape index: {}]
  %s5 = inlined_call_operand.hbm [shape: f32[1,128], index: 5, kind: output, shape index: {}]
  %s6 = sld [smem:[#allocation0]]
  $region38: #{tpu_custom_call.1} parent=0
    _
  %s8 = ssub.s32 1, %s6
  %s9 = scalar_select 0, %s8, %s6
  %10 = sst [smem:[#allocation2]] %s4
  $region1: #{tpu_custom_call.1} parent=0
    #allocation3 [shape = 'u8[32768]{0}', space=vmem, size = 0x8000, scoped, tag = 'input window, operand 0, single buffered']
    #allocation4 [shape = 's32[1]{0}', space=sflag, size = 0x4, scoped, tag = 'scoped memory for tpu_custom_call.1']
    #allocation5 [shape = 's32[1]{0}', space=sflag, size = 0x4, scoped, tag = 'scoped memory for tpu_custom_call.1']
    #allocation6 [shape = 'u8[32768]{0}', space=vmem, size = 0x8000, scoped, tag = 'input window, operand 1, single buffered']
    #allocation7 [shape = 's32[1]{0}', space=sflag, size = 0x4, scoped, tag = 'scoped memory for tpu_custom_call.1']
    #allocation8 [shape = 'u8[512]{0}', space=vmem, size = 0x400, scoped, tag = 'output window, operand 0, single buffered']
    %11 = vsyncpa [#allocation4], 0
    %12 = vsyncpa [#allocation7], 0
    %13 = vsyncpa [#allocation5], 0
    // Predicated region
    $region2: #{tpu_custom_call.1} parent=1 // pred_check
      _
    $region3: #{tpu_custom_call.1} parent=1 // pred_check_branch
      %15 = sbr.rel (0) target = $region5
    $region4: #{tpu_custom_call.1} parent=1 // pred_region
      %s17 = ssub.s32 1024, 1024
      %18 = vsyncadd [#allocation4], %s17
      %s19 = sshll.u32 [#allocation3], 4
      %s20 = int_to_ptr.vmem [resolvable:$true] %s19
      %25 = dma.hbm_to_vmem [thread:$0]  %s0, 1024, %s20, [#allocation4], 64, 64, 4
    $region5: #{tpu_custom_call.1} parent=1 // pred_fallthru
      _
    // Predicated region
    $region6: #{tpu_custom_call.1} parent=1 // pred_check
      _
    $region7: #{tpu_custom_call.1} parent=1 // pred_check_branch
      %27 = sbr.rel (0) target = $region9
    $region8: #{tpu_custom_call.1} parent=1 // pred_region
      %s29 = ssub.s32 1024, 1024
      %30 = vsyncadd [#allocation7], %s29
      %s31 = sshll.u32 [#allocation6], 4
      %s32 = int_to_ptr.vmem [resolvable:$true] %s31
      %37 = dma.hbm_to_vmem [thread:$0]  %s1, 1024, %s32, [#allocation7], 64, 64, 4
    $region9: #{tpu_custom_call.1} parent=1 // pred_fallthru
      _
    // Predicated region
    $region10: #{tpu_custom_call.1} parent=1 // pred_check
      _
    $region11: #{tpu_custom_call.1} parent=1 // pred_check_branch
      %39 = sbr.rel (0) target = $region13
    $region12: #{tpu_custom_call.1} parent=1 // pred_region
      _
    $region13: #{tpu_custom_call.1} parent=1 // pred_fallthru
      _
    // Predicated region
    $region14: #{tpu_custom_call.1} parent=1 // pred_check
      _
    $region15: #{tpu_custom_call.1} parent=1 // pred_check_branch
      %41 = sbr.rel (0) target = $region17
    $region16: #{tpu_custom_call.1} parent=1 // pred_region
      _
    $region17: #{tpu_custom_call.1} parent=1 // pred_fallthru
      _
    // Predicated region
    $region18: #{tpu_custom_call.1} parent=1 // pred_check
      _
    $region19: #{tpu_custom_call.1} parent=1 // pred_check_branch
      %43 = sbr.rel (0) target = $region21
    $region20: #{tpu_custom_call.1} parent=1 // pred_region
      _
    $region21: #{tpu_custom_call.1} parent=1 // pred_fallthru
      _
    // Predicated region
    $region22: #{tpu_custom_call.1} parent=1 // pred_check
      _
    $region23: #{tpu_custom_call.1} parent=1 // pred_check_branch
      %45 = sbr.rel (0) target = $region25
    $region24: #{tpu_custom_call.1} parent=1 // pred_region
      %46 = dma.done [#allocation4], 1024
    $region25: #{tpu_custom_call.1} parent=1 // pred_fallthru
      _
    // Predicated region
    $region26: #{tpu_custom_call.1} parent=1 // pred_check
      _
    $region27: #{tpu_custom_call.1} parent=1 // pred_check_branch
      %48 = sbr.rel (0) target = $region29
    $region28: #{tpu_custom_call.1} parent=1 // pred_region
      %49 = dma.done [#allocation7], 1024
    $region29: #{tpu_custom_call.1} parent=1 // pred_fallthru
      _
    %v51 = vld [vmem:[#allocation3] sm:$0xf]
    %v52 = vld [vmem:[#allocation3 + $0x4] sm:$0xf]
    %v53 = vld [vmem:[#allocation3 + $0x8] sm:$0xf]
    %v54 = vld [vmem:[#allocation3 + $0xc] sm:$0xf]
    %v55 = vld [vmem:[#allocation3 + $0x10] sm:$0xf]
    %v56 = vld [vmem:[#allocation3 + $0x14] sm:$0xf]
    %v57 = vld [vmem:[#allocation3 + $0x18] sm:$0xf]
    %v58 = vld [vmem:[#allocation3 + $0x1c] sm:$0xf]
    %v59 = vld [vmem:[#allocation3 + $0x20] sm:$0xf]
    %v60 = vld [vmem:[#allocation3 + $0x24] sm:$0xf]
    %v61 = vld [vmem:[#allocation3 + $0x28] sm:$0xf]
    %v62 = vld [vmem:[#allocation3 + $0x2c] sm:$0xf]
    %v63 = vld [vmem:[#allocation3 + $0x30] sm:$0xf]
    %v64 = vld [vmem:[#allocation3 + $0x34] sm:$0xf]
    %v65 = vld [vmem:[#allocation3 + $0x38] sm:$0xf]
    %v66 = vld [vmem:[#allocation3 + $0x3c] sm:$0xf]
    %v67 = vld [vmem:[#allocation6] sm:$0xf]
    %v68 = vld [vmem:[#allocation6 + $0x4] sm:$0xf]
    %v69 = vld [vmem:[#allocation6 + $0x8] sm:$0xf]
    %v70 = vld [vmem:[#allocation6 + $0xc] sm:$0xf]
    %v71 = vld [vmem:[#allocation6 + $0x10] sm:$0xf]
    %v72 = vld [vmem:[#allocation6 + $0x14] sm:$0xf]
    %v73 = vld [vmem:[#allocation6 + $0x18] sm:$0xf]
    %v74 = vld [vmem:[#allocation6 + $0x1c] sm:$0xf]
    %v75 = vld [vmem:[#allocation6 + $0x20] sm:$0xf]
    %v76 = vld [vmem:[#allocation6 + $0x24] sm:$0xf]
    %v77 = vld [vmem:[#allocation6 + $0x28] sm:$0xf]
    %v78 = vld [vmem:[#allocation6 + $0x2c] sm:$0xf]
    %v79 = vld [vmem:[#allocation6 + $0x30] sm:$0xf]
    %v80 = vld [vmem:[#allocation6 + $0x34] sm:$0xf]
    %v81 = vld [vmem:[#allocation6 + $0x38] sm:$0xf]
    %v82 = vld [vmem:[#allocation6 + $0x3c] sm:$0xf]
    %v83 = vld [vmem:[%s2] sm:$0x1]
    %v85 = vlaneseq
    %v86 = vshrl.u32 %v85, 7
    %v87 = vsub.s32 0, %v86
    %v88 = vrot.slane %v83, %v87
    %v106 = vunpack.c.l.b16 %v51
    %v107 = vunpack.c.l.b16 %v52
    %v108 = vunpack.c.l.b16 %v53
    %v109 = vunpack.c.l.b16 %v54
    %v110 = vunpack.c.l.b16 %v55
    %v111 = vunpack.c.l.b16 %v56
    %v112 = vunpack.c.l.b16 %v57
    %v113 = vunpack.c.l.b16 %v58
    %v114 = vunpack.c.l.b16 %v59
    %v115 = vunpack.c.l.b16 %v60
    %v116 = vunpack.c.l.b16 %v61
    %v117 = vunpack.c.l.b16 %v62
    %v118 = vunpack.c.l.b16 %v63
    %v119 = vunpack.c.l.b16 %v64
    %v120 = vunpack.c.l.b16 %v65
    %v121 = vunpack.c.l.b16 %v66
    %v122 = vpack.c.b16 %v107, %v106
    %v123 = vpack.c.b16 %v109, %v108
    %v124 = vpack.c.b16 %v111, %v110
    %v125 = vpack.c.b16 %v113, %v112
    %v126 = vpack.c.b16 %v115, %v114
    %v127 = vpack.c.b16 %v117, %v116
    %v128 = vpack.c.b16 %v119, %v118
    %v129 = vpack.c.b16 %v121, %v120
    %v154 = vunpack.c.l.b16 %v67
    %v155 = vunpack.c.l.b16 %v68
    %v156 = vunpack.c.l.b16 %v69
    %v157 = vunpack.c.l.b16 %v70
    %v158 = vunpack.c.l.b16 %v71
    %v159 = vunpack.c.l.b16 %v72
    %v160 = vunpack.c.l.b16 %v73
    %v161 = vunpack.c.l.b16 %v74
    %v162 = vunpack.c.l.b16 %v75
    %v163 = vunpack.c.l.b16 %v76
    %v164 = vunpack.c.l.b16 %v77
    %v165 = vunpack.c.l.b16 %v78
    %v166 = vunpack.c.l.b16 %v79
    %v167 = vunpack.c.l.b16 %v80
    %v168 = vunpack.c.l.b16 %v81
    %v169 = vunpack.c.l.b16 %v82
    %v170 = vpack.c.b16 %v155, %v154
    %v171 = vpack.c.b16 %v157, %v156
    %v172 = vpack.c.b16 %v159, %v158
    %v173 = vpack.c.b16 %v161, %v160
    %v174 = vpack.c.b16 %v163, %v162
    %v175 = vpack.c.b16 %v165, %v164
    %v176 = vpack.c.b16 %v167, %v166
    %v177 = vpack.c.b16 %v169, %v168
    %186 = vmatprep.subr.bf16.mxu0 0
    %187 = vmatpush1.bf16.msra.mxu0 %v177
    %188 = vmatprep.subr.bf16.mxu0 0
    %189 = vmatpush1.bf16.msra.mxu0 %v176
    %190 = vmatprep.subr.bf16.mxu0 0
    %191 = vmatpush1.bf16.msra.mxu0 %v175
    %192 = vmatprep.subr.bf16.mxu0 0
    %193 = vmatpush1.bf16.msra.mxu0 %v174
    %194 = vmatprep.subr.bf16.mxu0 0
    %195 = vmatpush1.bf16.msra.mxu0 %v173
    %196 = vmatprep.subr.bf16.mxu0 0
    %197 = vmatpush1.bf16.msra.mxu0 %v172
    %198 = vmatprep.subr.bf16.mxu0 0
    %199 = vmatpush1.bf16.msra.mxu0 %v171
    %200 = vmatprep.subr.bf16.mxu0 0
    %201 = vmatpush1.bf16.msra.mxu0 %v170
    %202 = vmatprep.subr.bf16.mxu0 0
    %203 = vmatpush2.bf16.msra.mxu0 0
    %204 = vmatprep.subr.bf16.mxu0 0
    %205 = vmatpush2.bf16.msra.mxu0 0
    %206 = vmatprep.subr.bf16.mxu0 0
    %207 = vmatpush2.bf16.msra.mxu0 0
    %208 = vmatprep.subr.bf16.mxu0 0
    %209 = vmatpush2.bf16.msra.mxu0 0
    %210 = vmatprep.subr.bf16.mxu0 0
    %211 = vmatpush2.bf16.msra.mxu0 0
    %212 = vmatprep.subr.bf16.mxu0 0
    %213 = vmatpush2.bf16.msra.mxu0 0
    %214 = vmatprep.subr.bf16.mxu0 0
    %215 = vmatpush2.bf16.msra.mxu0 0
    %216 = vmatprep.subr.bf16.mxu0 0
    %217 = vmatpush2.bf16.msra.mxu0 0
    %218 = vmatprep.mubr.bf16.mxu0 0
    %219 = vmatmul.mubr.bf16.gmra.mxu0 %v122
    %v220 = vpop.f32.mrf.mxu0
    %v221 = vadd.f32 %v88, %v220
    %v222 = vpop.f32.mrf.mxu0
    %v223 = vpop.f32.mrf.mxu0
    %v224 = vadd.f32 %v88, %v223
    %v225 = vpop.f32.mrf.mxu0
    %226 = vmatprep.mubr.bf16.mxu0 0
    %227 = vmatmul.mubr.bf16.gmra.mxu0 %v123
    %v228 = vpop.f32.mrf.mxu0
    %v229 = vadd.f32 %v88, %v228
    %v230 = vpop.f32.mrf.mxu0
    %v231 = vpop.f32.mrf.mxu0
    %v232 = vadd.f32 %v88, %v231
    %v233 = vpop.f32.mrf.mxu0
    %234 = vmatprep.mubr.bf16.mxu0 0
    %235 = vmatmul.mubr.bf16.gmra.mxu0 %v124
    %v236 = vpop.f32.mrf.mxu0
    %v237 = vadd.f32 %v88, %v236
    %v238 = vpop.f32.mrf.mxu0
    %v239 = vpop.f32.mrf.mxu0
    %v240 = vadd.f32 %v88, %v239
    %v241 = vpop.f32.mrf.mxu0
    %242 = vmatprep.mubr.bf16.mxu0 0
    %243 = vmatmul.mubr.bf16.gmra.mxu0 %v125
    %v244 = vpop.f32.mrf.mxu0
    %v245 = vadd.f32 %v88, %v244
    %v246 = vpop.f32.mrf.mxu0
    %v247 = vpop.f32.mrf.mxu0
    %v248 = vadd.f32 %v88, %v247
    %v249 = vpop.f32.mrf.mxu0
    %250 = vmatprep.mubr.bf16.mxu0 0
    %251 = vmatmul.mubr.bf16.gmra.mxu0 %v126
    %v252 = vpop.f32.mrf.mxu0
    %v253 = vadd.f32 %v88, %v252
    %v254 = vpop.f32.mrf.mxu0
    %v255 = vpop.f32.mrf.mxu0
    %v256 = vadd.f32 %v88, %v255
    %v257 = vpop.f32.mrf.mxu0
    %258 = vmatprep.mubr.bf16.mxu0 0
    %259 = vmatmul.mubr.bf16.gmra.mxu0 %v127
    %v260 = vpop.f32.mrf.mxu0
    %v261 = vadd.f32 %v88, %v260
    %v262 = vpop.f32.mrf.mxu0
    %v263 = vpop.f32.mrf.mxu0
    %v264 = vadd.f32 %v88, %v263
    %v265 = vpop.f32.mrf.mxu0
    %266 = vmatprep.mubr.bf16.mxu0 0
    %267 = vmatmul.mubr.bf16.gmra.mxu0 %v128
    %v268 = vpop.f32.mrf.mxu0
    %v269 = vadd.f32 %v88, %v268
    %v270 = vpop.f32.mrf.mxu0
    %v271 = vpop.f32.mrf.mxu0
    %v272 = vadd.f32 %v88, %v271
    %v273 = vpop.f32.mrf.mxu0
    %274 = vmatprep.mubr.bf16.mxu0 0
    %275 = vmatmul.mubr.bf16.gmra.mxu0 %v129
    %v276 = vpop.f32.mrf.mxu0
    %v277 = vadd.f32 %v88, %v276
    %v278 = vpop.f32.mrf.mxu0
    %v279 = vpop.f32.mrf.mxu0
    %v280 = vadd.f32 %v88, %v279
    %v281 = vpop.f32.mrf.mxu0
    %282 = vdwg.mxu0
    %v283 = vmax.f32 %v221, 0.0
    %v284 = vmax.f32 %v224, 0.0
    %v285 = vmax.f32 %v229, 0.0
    %v286 = vmax.f32 %v232, 0.0
    %v287 = vmax.f32 %v237, 0.0
    %v288 = vmax.f32 %v240, 0.0
    %v289 = vmax.f32 %v245, 0.0
    %v290 = vmax.f32 %v248, 0.0
    %v291 = vmax.f32 %v253, 0.0
    %v292 = vmax.f32 %v256, 0.0
    %v293 = vmax.f32 %v261, 0.0
    %v294 = vmax.f32 %v264, 0.0
    %v295 = vmax.f32 %v269, 0.0
    %v296 = vmax.f32 %v272, 0.0
    %v297 = vmax.f32 %v277, 0.0
    %v298 = vmax.f32 %v280, 0.0
    %v299 = vld [vmem:[%s3] sm:$0x1]
    %s300 = sld [smem:[#allocation2]]
    %v301 = vstv %s300
    %302 = vmatprep.subr.mxu0 0.0
    %303 = vmatpush1.xpose.msra.mxu0 %v298
    %304 = vmatprep.subr.mxu0 0.0
    %305 = vmatpush1.xpose.msra.mxu0 %v297
    %306 = vmatprep.subr.mxu0 0.0
    %307 = vmatpush1.xpose.msra.mxu0 %v296
    %308 = vmatprep.subr.mxu0 0.0
    %309 = vmatpush1.xpose.msra.mxu0 %v295
    %310 = vmatprep.subr.mxu0 0.0
    %311 = vmatpush1.xpose.msra.mxu0 %v294
    %312 = vmatprep.subr.mxu0 0.0
    %313 = vmatpush1.xpose.msra.mxu0 %v293
    %314 = vmatprep.subr.mxu0 0.0
    %315 = vmatpush1.xpose.msra.mxu0 %v292
    %316 = vmatprep.subr.mxu0 0.0
    %317 = vmatpush1.xpose.msra.mxu0 %v291
    %318 = vmatprep.subr.mxu0 0.0
    %319 = vmatpush1.xpose.msra.mxu0 %v290
    %320 = vmatprep.subr.mxu0 0.0
    %321 = vmatpush1.xpose.msra.mxu0 %v289
    %322 = vmatprep.subr.mxu0 0.0
    %323 = vmatpush1.xpose.msra.mxu0 %v288
    %324 = vmatprep.subr.mxu0 0.0
    %325 = vmatpush1.xpose.msra.mxu0 %v287
    %326 = vmatprep.subr.mxu0 0.0
    %327 = vmatpush1.xpose.msra.mxu0 %v286
    %328 = vmatprep.subr.mxu0 0.0
    %329 = vmatpush1.xpose.msra.mxu0 %v285
    %330 = vmatprep.subr.mxu0 0.0
    %331 = vmatpush1.xpose.msra.mxu0 %v284
    %332 = vmatprep.subr.mxu0 0.0
    %333 = vmatpush1.xpose.msra.mxu0 %v283
    %334 = vmatprep.subr.mxu0 0.0
    %335 = vmatpush2.xpose.msra.mxu0 0.0
    %336 = vmatprep.subr.mxu0 0.0
    %337 = vmatpush2.xpose.msra.mxu0 0.0
    %338 = vmatprep.subr.mxu0 0.0
    %339 = vmatpush2.xpose.msra.mxu0 0.0
    %340 = vmatprep.subr.mxu0 0.0
    %341 = vmatpush2.xpose.msra.mxu0 0.0
    %342 = vmatprep.subr.mxu0 0.0
    %343 = vmatpush2.xpose.msra.mxu0 0.0
    %344 = vmatprep.subr.mxu0 0.0
    %345 = vmatpush2.xpose.msra.mxu0 0.0
    %346 = vmatprep.subr.mxu0 0.0
    %347 = vmatpush2.xpose.msra.mxu0 0.0
    %348 = vmatprep.subr.mxu0 0.0
    %349 = vmatpush2.xpose.msra.mxu0 0.0
    %350 = vmatprep.subr.mxu0 0.0
    %351 = vmatpush2.xpose.msra.mxu0 0.0
    %352 = vmatprep.subr.mxu0 0.0
    %353 = vmatpush2.xpose.msra.mxu0 0.0
    %354 = vmatprep.subr.mxu0 0.0
    %355 = vmatpush2.xpose.msra.mxu0 0.0
    %356 = vmatprep.subr.mxu0 0.0
    %357 = vmatpush2.xpose.msra.mxu0 0.0
    %358 = vmatprep.subr.mxu0 0.0
    %359 = vmatpush2.xpose.msra.mxu0 0.0
    %360 = vmatprep.subr.mxu0 0.0
    %361 = vmatpush2.xpose.msra.mxu0 0.0
    %362 = vmatprep.subr.mxu0 0.0
    %363 = vmatpush2.xpose.msra.mxu0 0.0
    %364 = vmatprep.subr.mxu0 0.0
    %365 = vmatpush2.xpose.msra.mxu0 0.0
    %366 = vmatprep.mubr.f32.mxu0 0.0
    %367 = vmatmul.mubr.f32.gmra.mxu0 %v299
    %v368 = vpop.f32.mrf.mxu0
    %v369 = vadd.f32 %v301, %v368
    %v370 = vpop.f32.mrf.mxu0
    %371 = vdwg.mxu0
    %372 = vst [vmem:[#allocation8] sm:$0x1] %v369
    // Predicated region
    $region30: #{tpu_custom_call.1} parent=1 // pred_check
      _
    $region31: #{tpu_custom_call.1} parent=1 // pred_check_branch
      %374 = sbr.rel (0) target = $region33
    $region32: #{tpu_custom_call.1} parent=1 // pred_region
      %s376 = ssub.s32 16, 16
      %377 = vsyncadd [#allocation5], %s376
      %s379 = sshll.u32 [#allocation8], 4
      %s380 = int_to_ptr.vmem [resolvable:$true] %s379
      %382 = dma.vmem_to_hbm [thread:$0]  %s380, 16, %s5, [#allocation5]
    $region33: #{tpu_custom_call.1} parent=1 // pred_fallthru
      _
    // Predicated region
    $region34: #{tpu_custom_call.1} parent=1 // pred_check
      _
    $region35: #{tpu_custom_call.1} parent=1 // pred_check_branch
      %384 = sbr.rel (0) target = $region37
    $region36: #{tpu_custom_call.1} parent=1 // pred_region
      %385 = dma.done [#allocation5], 16
    $region37: #{tpu_custom_call.1} parent=1 // pred_fallthru
      _
    %386 = vsyncpa [#allocation4], 1
    %387 = vsyncpa [#allocation7], 1
    %388 = vsyncpa [#allocation5], 1

</llo_original>
